<compile_context>
chip_gen: v5e
topology: v5e:2x2
jax: 0.10.0
libtpu: 0.0.40
codegen_flags: <defaults>
</compile_context>

<pallas_src>
import functools
import math

import numpy as np

import jax
import jax.numpy as jnp
from jax import lax
from jax.experimental import pallas as pl
from jax.experimental.pallas import tpu as pltpu


def _round_up(x, m):
    return ((x + m - 1) // m) * m


def _cdc_kernel(W, x_ref, m_ref, w_ref, o_ref, xbig_ref):
    """Fused 3x3 CDC conv on one image (flat channel-major layout).

    x_ref   : (1, Cin, HWp)     flattened image, f32 (HWp = H*W rounded to 128)
    m_ref   : (2, HWp)          column masks: row 0 drops the input's last
                                column (for dx=-1 taps), row 1 drops the first
                                column (for dx=+1 taps); f32 0/1
    w_ref   : (Cout_p, 9*Cin)   per-tap weights, centre tap has theta folded in
    o_ref   : (1, Cout_p, HWp)  NCHW-flattened output (lane-dense store)
    xbig_ref: (9*Cin, HWp)      VMEM scratch: the 9 shifted tap copies (im2col)
    """
    Cin = x_ref.shape[1]
    HWp = x_ref.shape[2]

    xf = x_ref[0]                          # (Cin, HWp), lane-dense
    masks = m_ref[...]                     # (2, HWp)

    # Column masks are applied to the *input* before shifting: a dx=-1 tap must
    # never see the input's last column (it would wrap into the next row's
    # first output pixel); a dx=+1 tap must never see the first column.  Row
    # (dy) out-of-bounds is handled by the zero fill of the shifts below.
    x_by_dx = {
        -1: xf * masks[0:1, :],
        0: xf,
        1: xf * masks[1:2, :],
    }

    # Build the (9*Cin, HWp) im2col-in-VMEM matrix: tap t = ky*3 + kx occupies
    # rows [t*Cin, (t+1)*Cin) and holds the input shifted by s = dy*W + dx,
    # zero-filled at both ends (rows above/below the image read 0).
    for t in range(9):                     # static unroll: 9 taps
        ky, kx = divmod(t, 3)
        dy, dx = ky - 1, kx - 1
        s = dy * W + dx
        xm = x_by_dx[dx]
        rows = pl.ds(t * Cin, Cin)
        if s == 0:
            xbig_ref[rows, :] = xm
        elif s > 0:
            xbig_ref[rows, pl.ds(0, HWp - s)] = xm[:, s:]
            xbig_ref[rows, pl.ds(HWp - s, s)] = jnp.zeros((Cin, s), xm.dtype)
        else:
            xbig_ref[rows, pl.ds(-s, HWp + s)] = xm[:, :HWp + s]
            xbig_ref[rows, pl.ds(0, -s)] = jnp.zeros((Cin, -s), xm.dtype)

    # Single MXU pass: K = 9*Cin, N = HWp on lanes, f32 accumulation.  The
    # result is already NCHW-flattened -> direct lane-dense store.
    out = jnp.dot(w_ref[...], xbig_ref[...], preferred_element_type=jnp.float32)
    o_ref[0] = out.astype(o_ref.dtype)


def cd_conv2d(x_nchw, weight, theta=0.5):
    """CD_Conv2d forward.

    x_nchw: (N, Cin, H, W) float32.  weight: (Cout, Cin, 3, 3) float32.
    stride=1, padding=1, dilation=1, groups=1, bias=False (module defaults).
    `theta` must be a static Python scalar (as in the PyTorch module).
    """
    N, Cin, H, W = x_nchw.shape
    Cout, Cin_w, KH, KW = weight.shape
    assert (KH, KW) == (3, 3) and Cin_w == Cin
    assert H >= 2 and W >= 2, "flat-shift formulation assumes H, W >= 2"

    HW = H * W
    HWp = _round_up(HW, 128)               # lane-dense blocks / unmasked stores
    Cout_p = _round_up(Cout, 8)            # sublane-aligned output rows

    # ---- weights: (Cout, Cin, ky, kx) -> (Cout, 9*Cin), theta folded in ----
    w32 = weight.astype(jnp.float32)
    w_all = jnp.transpose(w32, (0, 2, 3, 1)).reshape(Cout, 9 * Cin)
    if math.fabs(float(theta) - 0.0) >= 1e-8:
        # The 1x1 "diff" conv reads exactly the centre pixel of each 3x3
        # patch, so -theta*kernel_diff folds into the centre tap (t = 4).
        kdiff = w32.sum(axis=(2, 3))                        # (Cout, Cin)
        w_all = w_all.at[:, 4 * Cin:5 * Cin].add(-float(theta) * kdiff)
    if Cout_p != Cout:
        w_all = jnp.pad(w_all, ((0, Cout_p - Cout), (0, 0)))

    # ---- column-validity masks (static constants, fetched once) ----
    col = np.arange(HWp) % W
    masks = jnp.asarray(
        np.stack([(col != W - 1), (col != 0)], axis=0).astype(np.float32))

    # ---- input: free metadata reshape to the flat channel-major layout ----
    x_flat = x_nchw.astype(jnp.float32).reshape(N, Cin, HW)
    if HWp != HW:
        # Only needed when H*W is not already a multiple of 128.
        x_flat = jnp.pad(x_flat, ((0, 0), (0, 0), (0, HWp - HW)))

    # ---- VMEM budget (per grid step; pipeline blocks double-buffered) ----
    bpe = 4
    blk = 2 * (Cin * HWp + Cout_p * HWp + Cout_p * 9 * Cin + 2 * HWp) * bpe
    scratch = 9 * Cin * HWp * bpe
    temps = 6 * max(Cin, Cout_p) * HWp * bpe                # shifted copies/acc
    est = blk + scratch + temps
    assert est <= 28 * (1 << 20), (
        "per-image tile too large for VMEM; "
        "TODO(synk): row-block tiling with a +-(W+1) halo for large images")
    # Explicit scoped-VMEM limit, capped so it stays safe on v7x (64 MiB phys).
    vmem_limit = int(min(32 * (1 << 20), max(8 * (1 << 20), 2 * est)))

    out = pl.pallas_call(
        functools.partial(_cdc_kernel, W),
        out_shape=jax.ShapeDtypeStruct((N, Cout_p, HWp), jnp.float32),
        grid_spec=pltpu.PrefetchScalarGridSpec(
            num_scalar_prefetch=0,
            grid=(N,),
            in_specs=[
                # one flattened image per grid step (lane-dense)
                pl.BlockSpec((1, Cin, HWp), lambda n: (n, 0, 0)),
                # constant blocks: fetched once, kept resident
                pl.BlockSpec((2, HWp), lambda n: (0, 0)),
                pl.BlockSpec((Cout_p, 9 * Cin), lambda n: (0, 0)),
            ],
            out_specs=pl.BlockSpec((1, Cout_p, HWp), lambda n: (n, 0, 0)),
            scratch_shapes=[pltpu.VMEM((9 * Cin, HWp), jnp.float32)],
        ),
        compiler_params=pltpu.CompilerParams(
            dimension_semantics=("parallel",),   # images are independent
            vmem_limit_bytes=vmem_limit,
        ),
    )(x_flat, masks, w_all)

    return out[:, :Cout, :HW].reshape(N, Cout, H, W)


def _reference(x_nchw, weight, theta):
    dn = ("NCHW", "OIHW", "NCHW")
    out_normal = lax.conv_general_dilated(
        x_nchw, weight, window_strides=(1, 1),
        padding=((1, 1), (1, 1)), dimension_numbers=dn)
    if math.fabs(theta - 0.0) < 1e-8:
        return out_normal
    kdiff = weight.sum(axis=(2, 3))[:, :, None, None]
    out_diff = lax.conv_general_dilated(
        x_nchw, kdiff, window_strides=(1, 1),
        padding="VALID", dimension_numbers=dn)
    return out_normal - theta * out_diff


if __name__ == "__main__":
    key = jax.random.PRNGKey(0)
    k_x, k_w = jax.random.split(key)

    N, Cin, H, W = 2, 4, 16, 16
    Cout, K = 8, 3
    theta = 0.5

    x = jax.random.normal(k_x, (N, Cin, H, W), dtype=jnp.float32)
    # Deterministic kaiming-uniform-like init (matches nn.Conv2d shapes).
    fan_in = Cin * K * K
    bound = 1.0 / math.sqrt(fan_in)
    w = jax.random.uniform(k_w, (Cout, Cin, K, K),
                           minval=-bound, maxval=bound, dtype=jnp.float32)

    # theta = 0.5 path (CDC).
    ref = _reference(x, w, theta)
    out = jax.block_until_ready(cd_conv2d(x, w, theta=theta))
    assert out.shape == (N, Cout, H, W)
    assert out.dtype == jnp.float32
    assert jnp.allclose(out, ref, atol=1e-4, rtol=1e-4), "CDC mismatch"

    # theta == 0 path (pure conv, no diff term folded).
    ref0 = _reference(x, w, 0.0)
    out0 = jax.block_until_ready(cd_conv2d(x, w, theta=0.0))
    assert jnp.allclose(out0, ref0, atol=1e-4, rtol=1e-4), "theta=0 mismatch"

    print("KERNEL_OK")
</pallas_src>

<mosaic_0001>
module attributes {stable_mosaic.version = 11 : i64} {
  func.func @_cdc_kernel(%arg0: i32, %arg1: memref<1x4x256xf32, #tpu.memory_space<vmem>>, %arg2: memref<2x256xf32, #tpu.memory_space<vmem>>, %arg3: memref<8x36xf32, #tpu.memory_space<vmem>>, %arg4: memref<1x8x256xf32, #tpu.memory_space<vmem>>, %arg5: memref<36x256xf32, #tpu.memory_space<vmem>>) attributes {dimension_semantics = [#tpu.dimension_semantics<parallel>], iteration_bounds = array<i64: 2>, scalar_prefetch = 0 : i64, scratch_operands = 1 : i64, tpu.core_type = #tpu.core_type<tc>, window_params = [{transform_indices = @transform_0, window_bounds = array<i64: 1, 4, 256>}, {pipeline_mode = #tpu.pipeline_mode<synchronous>, transform_indices = @transform_1, window_bounds = array<i64: 2, 256>}, {pipeline_mode = #tpu.pipeline_mode<synchronous>, transform_indices = @transform_2, window_bounds = array<i64: 8, 36>}, {transform_indices = @transform_3, window_bounds = array<i64: 1, 8, 256>}]} {
    %c0 = arith.constant 0 : index
    %c0_0 = arith.constant 0 : index
    %c0_1 = arith.constant 0 : index
    %0 = vector.load %arg1[%c0, %c0_0, %c0_1] : memref<1x4x256xf32, #tpu.memory_space<vmem>>, vector<1x4x256xf32>
    %1 = vector.shape_cast %0 : vector<1x4x256xf32> to vector<4x256xf32>
    %c0_2 = arith.constant 0 : index
    %c0_3 = arith.constant 0 : index
    %2 = vector.load %arg2[%c0_2, %c0_3] : memref<2x256xf32, #tpu.memory_space<vmem>>, vector<2x256xf32>
    %3 = vector.extract_strided_slice %2 {offsets = [0, 0], sizes = [1, 256], strides = [1, 1]} : vector<2x256xf32> to vector<1x256xf32>
    %4 = vector.broadcast %3 : vector<1x256xf32> to vector<4x256xf32>
    %5 = arith.mulf %1, %4 : vector<4x256xf32>
    %6 = vector.extract_strided_slice %2 {offsets = [1, 0], sizes = [1, 256], strides = [1, 1]} : vector<2x256xf32> to vector<1x256xf32>
    %7 = vector.broadcast %6 : vector<1x256xf32> to vector<4x256xf32>
    %8 = arith.mulf %1, %7 : vector<4x256xf32>
    %9 = vector.extract_strided_slice %5 {offsets = [0, 0], sizes = [4, 239], strides = [1, 1]} : vector<4x256xf32> to vector<4x239xf32>
    %c0_4 = arith.constant 0 : index
    %c17 = arith.constant 17 : index
    %10 = vector.load %arg5[%c0_4, %c17] : memref<36x256xf32, #tpu.memory_space<vmem>>, vector<4x239xf32>
    tpu.vector_store %arg5[%c0_4, %c17], %9 {strides = array<i32>} : memref<36x256xf32, #tpu.memory_space<vmem>>, vector<4x239xf32>,
    %cst = arith.constant 0.000000e+00 : f32
    %11 = vector.broadcast %cst : f32 to vector<4x17xf32>
    %c0_5 = arith.constant 0 : index
    %c0_6 = arith.constant 0 : index
    %12 = vector.load %arg5[%c0_5, %c0_6] : memref<36x256xf32, #tpu.memory_space<vmem>>, vector<4x17xf32>
    tpu.vector_store %arg5[%c0_5, %c0_6], %11 {strides = array<i32>} : memref<36x256xf32, #tpu.memory_space<vmem>>, vector<4x17xf32>,
    %13 = vector.extract_strided_slice %1 {offsets = [0, 0], sizes = [4, 240], strides = [1, 1]} : vector<4x256xf32> to vector<4x240xf32>
    %c4 = arith.constant 4 : index
    %c16 = arith.constant 16 : index
    %14 = vector.load %arg5[%c4, %c16] : memref<36x256xf32, #tpu.memory_space<vmem>>, vector<4x240xf32>
    tpu.vector_store %arg5[%c4, %c16], %13 {strides = array<i32>} : memref<36x256xf32, #tpu.memory_space<vmem>>, vector<4x240xf32>,
    %cst_7 = arith.constant 0.000000e+00 : f32
    %15 = vector.broadcast %cst_7 : f32 to vector<4x16xf32>
    %c4_8 = arith.constant 4 : index
    %c0_9 = arith.constant 0 : index
    %16 = vector.load %arg5[%c4_8, %c0_9] : memref<36x256xf32, #tpu.memory_space<vmem>>, vector<4x16xf32>
    tpu.vector_store %arg5[%c4_8, %c0_9], %15 {strides = array<i32>} : memref<36x256xf32, #tpu.memory_space<vmem>>, vector<4x16xf32>,
    %17 = vector.extract_strided_slice %8 {offsets = [0, 0], sizes = [4, 241], strides = [1, 1]} : vector<4x256xf32> to vector<4x241xf32>
    %c8 = arith.constant 8 : index
    %c15 = arith.constant 15 : index
    %18 = vector.load %arg5[%c8, %c15] : memref<36x256xf32, #tpu.memory_space<vmem>>, vector<4x241xf32>
    tpu.vector_store %arg5[%c8, %c15], %17 {strides = array<i32>} : memref<36x256xf32, #tpu.memory_space<vmem>>, vector<4x241xf32>,
    %cst_10 = arith.constant 0.000000e+00 : f32
    %19 = vector.broadcast %cst_10 : f32 to vector<4x15xf32>
    %c8_11 = arith.constant 8 : index
    %c0_12 = arith.constant 0 : index
    %20 = vector.load %arg5[%c8_11, %c0_12] : memref<36x256xf32, #tpu.memory_space<vmem>>, vector<4x15xf32>
    tpu.vector_store %arg5[%c8_11, %c0_12], %19 {strides = array<i32>} : memref<36x256xf32, #tpu.memory_space<vmem>>, vector<4x15xf32>,
    %21 = vector.extract_strided_slice %5 {offsets = [0, 0], sizes = [4, 255], strides = [1, 1]} : vector<4x256xf32> to vector<4x255xf32>
    %c12 = arith.constant 12 : index
    %c1 = arith.constant 1 : index
    %22 = vector.load %arg5[%c12, %c1] : memref<36x256xf32, #tpu.memory_space<vmem>>, vector<4x255xf32>
    tpu.vector_store %arg5[%c12, %c1], %21 {strides = array<i32>} : memref<36x256xf32, #tpu.memory_space<vmem>>, vector<4x255xf32>,
    %cst_13 = arith.constant 0.000000e+00 : f32
    %23 = vector.broadcast %cst_13 : f32 to vector<4x1xf32>
    %c12_14 = arith.constant 12 : index
    %c0_15 = arith.constant 0 : index
    %24 = vector.load %arg5[%c12_14, %c0_15] : memref<36x256xf32, #tpu.memory_space<vmem>>, vector<4x1xf32>
    tpu.vector_store %arg5[%c12_14, %c0_15], %23 {strides = array<i32>} : memref<36x256xf32, #tpu.memory_space<vmem>>, vector<4x1xf32>,
    %c16_16 = arith.constant 16 : index
    %c0_17 = arith.constant 0 : index
    %25 = vector.load %arg5[%c16_16, %c0_17] : memref<36x256xf32, #tpu.memory_space<vmem>>, vector<4x256xf32>
    tpu.vector_store %arg5[%c16_16, %c0_17], %1 {strides = array<i32>} : memref<36x256xf32, #tpu.memory_space<vmem>>, vector<4x256xf32>,
    %26 = vector.extract_strided_slice %8 {offsets = [0, 1], sizes = [4, 255], strides = [1, 1]} : vector<4x256xf32> to vector<4x255xf32>
    %c20 = arith.constant 20 : index
    %c0_18 = arith.constant 0 : index
    %27 = vector.load %arg5[%c20, %c0_18] : memref<36x256xf32, #tpu.memory_space<vmem>>, vector<4x255xf32>
    tpu.vector_store %arg5[%c20, %c0_18], %26 {strides = array<i32>} : memref<36x256xf32, #tpu.memory_space<vmem>>, vector<4x255xf32>,
    %cst_19 = arith.constant 0.000000e+00 : f32
    %28 = vector.broadcast %cst_19 : f32 to vector<4x1xf32>
    %c20_20 = arith.constant 20 : index
    %c255 = arith.constant 255 : index
    %29 = vector.load %arg5[%c20_20, %c255] : memref<36x256xf32, #tpu.memory_space<vmem>>, vector<4x1xf32>
    tpu.vector_store %arg5[%c20_20, %c255], %28 {strides = array<i32>} : memref<36x256xf32, #tpu.memory_space<vmem>>, vector<4x1xf32>,
    %30 = vector.extract_strided_slice %5 {offsets = [0, 15], sizes = [4, 241], strides = [1, 1]} : vector<4x256xf32> to vector<4x241xf32>
    %c24 = arith.constant 24 : index
    %c0_21 = arith.constant 0 : index
    %31 = vector.load %arg5[%c24, %c0_21] : memref<36x256xf32, #tpu.memory_space<vmem>>, vector<4x241xf32>
    tpu.vector_store %arg5[%c24, %c0_21], %30 {strides = array<i32>} : memref<36x256xf32, #tpu.memory_space<vmem>>, vector<4x241xf32>,
    %cst_22 = arith.constant 0.000000e+00 : f32
    %32 = vector.broadcast %cst_22 : f32 to vector<4x15xf32>
    %c24_23 = arith.constant 24 : index
    %c241 = arith.constant 241 : index
    %33 = vector.load %arg5[%c24_23, %c241] : memref<36x256xf32, #tpu.memory_space<vmem>>, vector<4x15xf32>
    tpu.vector_store %arg5[%c24_23, %c241], %32 {strides = array<i32>} : memref<36x256xf32, #tpu.memory_space<vmem>>, vector<4x15xf32>,
    %34 = vector.extract_strided_slice %1 {offsets = [0, 16], sizes = [4, 240], strides = [1, 1]} : vector<4x256xf32> to vector<4x240xf32>
    %c28 = arith.constant 28 : index
    %c0_24 = arith.constant 0 : index
    %35 = vector.load %arg5[%c28, %c0_24] : memref<36x256xf32, #tpu.memory_space<vmem>>, vector<4x240xf32>
    tpu.vector_store %arg5[%c28, %c0_24], %34 {strides = array<i32>} : memref<36x256xf32, #tpu.memory_space<vmem>>, vector<4x240xf32>,
    %cst_25 = arith.constant 0.000000e+00 : f32
    %36 = vector.broadcast %cst_25 : f32 to vector<4x16xf32>
    %c28_26 = arith.constant 28 : index
    %c240 = arith.constant 240 : index
    %37 = vector.load %arg5[%c28_26, %c240] : memref<36x256xf32, #tpu.memory_space<vmem>>, vector<4x16xf32>
    tpu.vector_store %arg5[%c28_26, %c240], %36 {strides = array<i32>} : memref<36x256xf32, #tpu.memory_space<vmem>>, vector<4x16xf32>,
    %38 = vector.extract_strided_slice %8 {offsets = [0, 17], sizes = [4, 239], strides = [1, 1]} : vector<4x256xf32> to vector<4x239xf32>
    %c32 = arith.constant 32 : index
    %c0_27 = arith.constant 0 : index
    %39 = vector.load %arg5[%c32, %c0_27] : memref<36x256xf32, #tpu.memory_space<vmem>>, vector<4x239xf32>
    tpu.vector_store %arg5[%c32, %c0_27], %38 {strides = array<i32>} : memref<36x256xf32, #tpu.memory_space<vmem>>, vector<4x239xf32>,
    %cst_28 = arith.constant 0.000000e+00 : f32
    %40 = vector.broadcast %cst_28 : f32 to vector<4x17xf32>
    %c32_29 = arith.constant 32 : index
    %c239 = arith.constant 239 : index
    %41 = vector.load %arg5[%c32_29, %c239] : memref<36x256xf32, #tpu.memory_space<vmem>>, vector<4x17xf32>
    tpu.vector_store %arg5[%c32_29, %c239], %40 {strides = array<i32>} : memref<36x256xf32, #tpu.memory_space<vmem>>, vector<4x17xf32>,
    %c0_30 = arith.constant 0 : index
    %c0_31 = arith.constant 0 : index
    %42 = vector.load %arg3[%c0_30, %c0_31] : memref<8x36xf32, #tpu.memory_space<vmem>>, vector<8x36xf32>
    %c0_32 = arith.constant 0 : index
    %c0_33 = arith.constant 0 : index
    %43 = vector.load %arg5[%c0_32, %c0_33] : memref<36x256xf32, #tpu.memory_space<vmem>>, vector<36x256xf32>
    %cst_34 = arith.constant dense<0.000000e+00> : vector<8x256xf32>
    %44 = tpu.matmul %42, %43, %cst_34 {dimension_numbers = #tpu.dot_dimension_numbers<[1], [0], [0], [1], [0, 0, 1, 1], [], []>} : vector<8x36xf32>, vector<36x256xf32>, vector<8x256xf32> -> vector<8x256xf32>
    %c0_35 = arith.constant 0 : index
    %c0_36 = arith.constant 0 : index
    %c0_37 = arith.constant 0 : index
    %45 = vector.load %arg4[%c0_35, %c0_36, %c0_37] : memref<1x8x256xf32, #tpu.memory_space<vmem>>, vector<1x8x256xf32>
    %46 = vector.shape_cast %45 : vector<1x8x256xf32> to vector<8x256xf32>
    %47 = vector.shape_cast %44 : vector<8x256xf32> to vector<1x8x256xf32>
    tpu.vector_store %arg4[%c0_35, %c0_36, %c0_37], %47 {strides = array<i32>} : memref<1x8x256xf32, #tpu.memory_space<vmem>>, vector<1x8x256xf32>,
    return
  }
  func.func @transform_0(%arg0: i32) -> (i32, i32, i32) {
    %c0_i32 = arith.constant 0 : i32
    %c0_i32_0 = arith.constant 0 : i32
    %c0_i32_1 = arith.constant 0 : i32
    return %arg0, %c0_i32, %c0_i32_0 : i32, i32, i32
  }
  func.func @transform_1(%arg0: i32) -> (i32, i32) {
    %c0_i32 = arith.constant 0 : i32
    %c0_i32_0 = arith.constant 0 : i32
    %c0_i32_1 = arith.constant 0 : i32
    return %c0_i32, %c0_i32_0 : i32, i32
  }
  func.func @transform_2(%arg0: i32) -> (i32, i32) {
    %c0_i32 = arith.constant 0 : i32
    %c0_i32_0 = arith.constant 0 : i32
    %c0_i32_1 = arith.constant 0 : i32
    return %c0_i32, %c0_i32_0 : i32, i32
  }
  func.func @transform_3(%arg0: i32) -> (i32, i32, i32) {
    %c0_i32 = arith.constant 0 : i32
    %c0_i32_0 = arith.constant 0 : i32
    %c0_i32_1 = arith.constant 0 : i32
    return %arg0, %c0_i32, %c0_i32_0 : i32, i32, i32
  }
}

</mosaic_0001>

<llo_original>
// kernel: tpu_custom_call.1
$region0: #{tpu_custom_call.1}
  #allocation0 [shape = 'u32[]', space=smem, size = 0x4, offset = 0x4, fixed_abs, tag = 'smem constant byte address 0x4 - core index']
  #allocation1 [shape = 'u32[72,128]{1,0:T(1,128)}', space=vmem, size = 0x9000, scoped, tag = 'internal scratch']
  #allocation2 [shape = 'f32[36,256]{1,0:T(8,128)}', space=vmem, size = 0xa000, scoped, tag = 'scratch operand']
  %s0 = inlined_call_operand.hbm [shape: f32[2,4,256], index: 0, kind: input, shape index: {}]
  %s1 = inlined_call_operand.hbm [shape: f32[2,256], index: 1, kind: input, shape index: {}]
  %s2 = inlined_call_operand.hbm [shape: f32[8,36], index: 2, kind: input, shape index: {}]
  %s3 = inlined_call_operand.hbm [shape: f32[2,8,256], index: 3, kind: output, shape index: {}]
  %s4 = sld [smem:[#allocation0]]
  $region57: #{tpu_custom_call.1} parent=0
    _
  %s6 = ssub.s32 1, %s4
  %s7 = scalar_select 0, %s6, %s4
  $region1: #{tpu_custom_call.1} parent=0
    #allocation3 [shape = 'u8[8192]{0}', space=vmem, size = 0x2000, scoped, tag = 'input window, operand 0']
    #allocation4 [shape = 's32[2]{0}', space=sflag, size = 0x8, scoped, tag = 'scoped memory for tpu_custom_call.1']
    #allocation5 [shape = 's32[2]{0}', space=sflag, size = 0x8, scoped, tag = 'scoped memory for tpu_custom_call.1']
    #allocation6 [shape = 'u8[2048]{0}', space=vmem, size = 0x800, scoped, tag = 'input window, operand 1, single buffered']
    #allocation7 [shape = 's32[1]{0}', space=sflag, size = 0x4, scoped, tag = 'scoped memory for tpu_custom_call.1']
    #allocation8 [shape = 'u8[4096]{0}', space=vmem, size = 0x1000, scoped, tag = 'input window, operand 2, single buffered']
    #allocation9 [shape = 'u8[16384]{0}', space=vmem, size = 0x4000, scoped, tag = 'output window, operand 0']
    %8 = vsyncpa [#allocation4], 0
    %s9 = scalar_lea.sflag [#allocation4], 1
    %10 = vsyncpa %s9, 0
    %11 = vsyncpa [#allocation7], 0
    %12 = vsyncpa [#allocation5], 0
    %s13 = scalar_lea.sflag [#allocation5], 1
    %14 = vsyncpa %s13, 0
    loop: start=0, step=1, limit=4
    $region2: #{tpu_custom_call.1} parent=1 // loop_pre_header
      _
    $region3: #{tpu_custom_call.1} parent=1 // loop_header
      %s16 = sphi 0, %s20
      %p17 = scmp.ge.s32.totalorder %s16, 4
      %s26 = sphi 0, %s28
      %s29 = sphi 0, %s26
      %s30 = sphi 0, %s29
      %s46 = sphi 0, %s30
      %s50 = sphi 0, %s50
      %s52 = sphi 0, %s50
      %s53 = sphi 0, %s52
      %s67 = sphi 0, %s53
      %s71 = sphi 0, %s71
      %s73 = sphi 0, %s71
      %s74 = sphi 0, %s73
      %s88 = sphi 0, %s74
      %s94 = sphi 0, %s96
      %s97 = sphi 0, %s94
      %s98 = sphi 0, %s97
      %s114 = sphi 0, %s98
    $region4: #{tpu_custom_call.1} parent=1 // loop_header_branch
      %19 = sbr.rel (%p17) target = $region8
    $region5: #{tpu_custom_call.1} parent=1 // loop_body
      %s21 = ssub.s32 %s16, 1
      %s22 = ssub.s32 %s16, 2
      %s23 = sadd.s32 %s16, 1
      %s24 = ssub.s32 %s16, %s23
      %p25 = scmp.eq.s32.totalorder %s24, 0
      %s27 = sadd.s32 %s26, 1
      %s28 = scalar_select %p25, %s26, %s27
      %p31 = pneg %p25
      %p32 = scmp.eq.s32.totalorder %s16, 1
      %p33 = por %p31, %p32
      %p34 = scmp.ne.s32.totalorder %s26, %s29
      %p35 = scmp.eq.s32.totalorder %s16, 0
      %p36 = por %p34, %p35
      %p37 = scmp.ne.s32.totalorder %s26, %s29
      %p38 = scmp.eq.s32.totalorder %s21, 1
      %p39 = por %p37, %p38
      %p40 = scmp.ne.s32.totalorder %s29, %s30
      %p41 = scmp.eq.s32.totalorder %s21, 0
      %p42 = por %p40, %p41
      %p43 = scmp.ne.s32.totalorder %s29, %s30
      %p44 = scmp.eq.s32.totalorder %s22, 1
      %p45 = por %p43, %p44
      %p47 = scmp.ne.s32.totalorder %s30, %s46
      %p48 = scmp.eq.s32.totalorder %s22, 0
      %p49 = por %p47, %p48
      %s51 = sadd.s32 %s50, 1
      %p54 = scmp.eq.s32.totalorder %s16, 1
      %p55 = scmp.ne.s32.totalorder %s50, %s52
      %p56 = scmp.eq.s32.totalorder %s16, 0
      %p57 = por %p55, %p56
      %p58 = scmp.ne.s32.totalorder %s50, %s52
      %p59 = scmp.eq.s32.totalorder %s21, 1
      %p60 = por %p58, %p59
      %p61 = scmp.ne.s32.totalorder %s52, %s53
      %p62 = scmp.eq.s32.totalorder %s21, 0
      %p63 = por %p61, %p62
      %p64 = scmp.ne.s32.totalorder %s52, %s53
      %p65 = scmp.eq.s32.totalorder %s22, 1
      %p66 = por %p64, %p65
      %p68 = scmp.ne.s32.totalorder %s53, %s67
      %p69 = scmp.eq.s32.totalorder %s22, 0
      %p70 = por %p68, %p69
      %s72 = sadd.s32 %s71, 1
      %p75 = scmp.eq.s32.totalorder %s16, 1
      %p76 = scmp.ne.s32.totalorder %s71, %s73
      %p77 = scmp.eq.s32.totalorder %s16, 0
      %p78 = por %p76, %p77
      %p79 = scmp.ne.s32.totalorder %s71, %s73
      %p80 = scmp.eq.s32.totalorder %s21, 1
      %p81 = por %p79, %p80
      %p82 = scmp.ne.s32.totalorder %s73, %s74
      %p83 = scmp.eq.s32.totalorder %s21, 0
      %p84 = por %p82, %p83
      %p85 = scmp.ne.s32.totalorder %s73, %s74
      %p86 = scmp.eq.s32.totalorder %s22, 1
      %p87 = por %p85, %p86
      %p89 = scmp.ne.s32.totalorder %s74, %s88
      %p90 = scmp.eq.s32.totalorder %s22, 0
      %p91 = por %p89, %p90
      %s92 = ssub.s32 %s16, %s23
      %p93 = scmp.eq.s32.totalorder %s92, 0
      %s95 = sadd.s32 %s94, 1
      %s96 = scalar_select %p93, %s94, %s95
      %p99 = pneg %p93
      %p100 = scmp.eq.s32.totalorder %s16, 1
      %p101 = por %p99, %p100
      %p102 = scmp.ne.s32.totalorder %s94, %s97
      %p103 = scmp.eq.s32.totalorder %s16, 0
      %p104 = por %p102, %p103
      %p105 = scmp.ne.s32.totalorder %s94, %s97
      %p106 = scmp.eq.s32.totalorder %s21, 1
      %p107 = por %p105, %p106
      %p108 = scmp.ne.s32.totalorder %s97, %s98
      %p109 = scmp.eq.s32.totalorder %s21, 0
      %p110 = por %p108, %p109
      %p111 = scmp.ne.s32.totalorder %s97, %s98
      %p112 = scmp.eq.s32.totalorder %s22, 1
      %p113 = por %p111, %p112
      %p115 = scmp.ne.s32.totalorder %s98, %s114
      %p116 = scmp.eq.s32.totalorder %s22, 0
      %p117 = por %p115, %p116
      %p118 = scmp.le.s32.totalorder 1, %s16
      %p119 = scmp.lt.s32.totalorder %s16, 3
      %p120 = pnand %p118, %p119
      %p121 = pneg %p120
      // Predicated region
      $region9: #{tpu_custom_call.1} parent=5 // pred_check
        _
      $region10: #{tpu_custom_call.1} parent=5 // pred_check_branch
        %123 = sbr.rel (%p120) target = $region12
      $region11: #{tpu_custom_call.1} parent=5 // pred_region
        %s124 = ssub.s32 %s16, 1
        // Predicated region
        $region13: #{tpu_custom_call.1} parent=11 // pred_check
          %p125 = pneg %p63
        $region14: #{tpu_custom_call.1} parent=11 // pred_check_branch
          %127 = sbr.rel (%p125) target = $region16
        $region15: #{tpu_custom_call.1} parent=11 // pred_region
          %129 = vsyncadd [#allocation7], 0
          %s131 = sshll.u32 %s1, 4
          %s132 = int_to_ptr.hbm [resolvable:$true] %s131
          %s133 = sshll.u32 [#allocation6], 4
          %s134 = int_to_ptr.vmem [resolvable:$true] %s133
          %136 = dma.hbm_to_vmem [thread:$0]  %s132, 64, %s134, [#allocation7]
        $region16: #{tpu_custom_call.1} parent=11 // pred_fallthru
          _
        // Predicated region
        $region17: #{tpu_custom_call.1} parent=11 // pred_check
          %p137 = pneg %p84
        $region18: #{tpu_custom_call.1} parent=11 // pred_check_branch
          %139 = sbr.rel (%p137) target = $region20
        $region19: #{tpu_custom_call.1} parent=11 // pred_region
          %141 = vsyncadd [#allocation7], 0
          %s143 = sshll.u32 %s2, 4
          %s144 = int_to_ptr.hbm [resolvable:$true] %s143
          %s145 = sshll.u32 [#allocation8], 4
          %s146 = int_to_ptr.vmem [resolvable:$true] %s145
          %148 = dma.hbm_to_vmem [thread:$0]  %s144, 128, %s146, [#allocation7]
        $region20: #{tpu_custom_call.1} parent=11 // pred_fallthru
          _
      $region12: #{tpu_custom_call.1} parent=5 // pred_fallthru
        _
      %p149 = scmp.lt.s32.totalorder %s16, 2
      // Predicated region
      $region21: #{tpu_custom_call.1} parent=5 // pred_check
        %p150 = pneg %p149
      $region22: #{tpu_custom_call.1} parent=5 // pred_check_branch
        %152 = sbr.rel (%p150) target = $region24
      $region23: #{tpu_custom_call.1} parent=5 // pred_region
        // Predicated region
        $region25: #{tpu_custom_call.1} parent=23 // pred_check
          %p153 = pneg %p36
        $region26: #{tpu_custom_call.1} parent=23 // pred_check_branch
          %155 = sbr.rel (%p153) target = $region28
        $region27: #{tpu_custom_call.1} parent=23 // pred_region
          %s156 = sand.u32 %s26, 1
          %s157 = scalar_lea.sflag [#allocation4], %s156
          %s158 = sand.u32 %s26, 1
          %s159 = smul.addr %s158, 8
          %s160 = scalar_lea.vmem [#allocation3], %s159
          %162 = vsyncadd %s157, 0
          %s163 = smul.addr %s16, 2
          %s164 = smul.addr %s163, 4
          %s165 = scalar_lea.hbm %s0, %s164
          %s167 = sshll.u32 %s165, 4
          %s168 = int_to_ptr.hbm [resolvable:$true] %s167
          %s169 = sshll.u32 %s160, 4
          %s170 = int_to_ptr.vmem [resolvable:$true] %s169
          %172 = dma.hbm_to_vmem [thread:$0]  %s168, 128, %s170, %s157
        $region28: #{tpu_custom_call.1} parent=23 // pred_fallthru
          _
      $region24: #{tpu_custom_call.1} parent=5 // pred_fallthru
        _
      %p173 = scmp.le.s32.totalorder 1, %s16
      %p174 = scmp.lt.s32.totalorder %s16, 3
      %p175 = pnand %p173, %p174
      %p176 = pneg %p175
      // Predicated region
      $region29: #{tpu_custom_call.1} parent=5 // pred_check
        _
      $region30: #{tpu_custom_call.1} parent=5 // pred_check_branch
        %178 = sbr.rel (%p175) target = $region32
      $region31: #{tpu_custom_call.1} parent=5 // pred_region
        %s179 = ssub.s32 %s16, 1
        %s180 = sand.u32 %s29, 1
        %s181 = scalar_lea.sflag [#allocation4], %s180
        %s182 = sand.u32 %s29, 1
        %s183 = smul.addr %s182, 8
        %s184 = scalar_lea.vmem [#allocation3], %s183
        // Predicated region
        $region33: #{tpu_custom_call.1} parent=31 // pred_check
          %p185 = pneg %p42
        $region34: #{tpu_custom_call.1} parent=31 // pred_check_branch
          %187 = sbr.rel (%p185) target = $region36
        $region35: #{tpu_custom_call.1} parent=31 // pred_region
          %189 = dma.done %s181, 128
        $region36: #{tpu_custom_call.1} parent=31 // pred_fallthru
          _
        // Predicated region
        $region37: #{tpu_custom_call.1} parent=31 // pred_check
          %p190 = pneg %p63
        $region38: #{tpu_custom_call.1} parent=31 // pred_check_branch
          %192 = sbr.rel (%p190) target = $region40
        $region39: #{tpu_custom_call.1} parent=31 // pred_region
          %194 = dma.done [#allocation7], 64
        $region40: #{tpu_custom_call.1} parent=31 // pred_fallthru
          _
        // Predicated region
        $region41: #{tpu_custom_call.1} parent=31 // pred_check
          %p195 = pneg %p84
        $region42: #{tpu_custom_call.1} parent=31 // pred_check_branch
          %197 = sbr.rel (%p195) target = $region44
        $region43: #{tpu_custom_call.1} parent=31 // pred_region
          %199 = dma.done [#allocation7], 128
        $region44: #{tpu_custom_call.1} parent=31 // pred_fallthru
          _
        %s200 = sand.u32 %s29, 1
        %s201 = scalar_lea.sflag [#allocation4], %s200
        %s202 = sand.u32 %s29, 1
        %s203 = smul.addr %s202, 8
        %s204 = scalar_lea.vmem [#allocation3], %s203
        %p205 = pneg %p42
        %p206 = pneg %p39
        %p207 = pneg %p63
        %p208 = pneg %p60
        %p209 = pneg %p84
        %p210 = pneg %p81
        %p211 = pneg %p110
        %p212 = pneg %p107
        %s213 = sand.u32 %s97, 1
        %s214 = scalar_lea.sflag [#allocation5], %s213
        %s215 = sand.u32 %s97, 1
        %s216 = smul.addr %s215, 16
        %s217 = scalar_lea.vmem [#allocation9], %s216
        %v218 = vld [vmem:[%s184] sm:$0xff]
        %v219 = vld [vmem:[#allocation6] sm:$0xf]
        %v221 = vperm.slane %v219, 0
        %v222 = vperm.slane %v219, 2
        %v225 = vperm.slane %v221, 0
        %v226 = vperm.slane %v222, 0
        %v229 = vrot.slane %v226, 4
        %vm230 = vcmask 1043456
        %v231 = vsel %vm230, %v225, %v229
        %v233 = vmul.f32 %v218, %v231
        %v234 = vperm.slane %v219, 1
        %v235 = vperm.slane %v219, 3
        %v238 = vperm.slane %v234, 1
        %v239 = vperm.slane %v235, 1
        %v242 = vrot.slane %v239, 4
        %v243 = vsel %vm230, %v238, %v242
        %v245 = vmul.f32 %v218, %v243
        %247 = vst [vmem:[#allocation1] ss:$2 sm:$0xff] %v233
        %v248 = vld.sshfl [vmem:[#allocation1] sm:$0xff pattern:$0x75316420]
        %v249 = vld.sshfl [vmem:[#allocation1 + $0x8] sm:$0xff pattern:$0x75316420]
        %250 = vrot.lane.b32.xlu0 %v248, 17
        %v251 = vpop.permute.xlu0 %250
        %252 = vrot.lane.b32.xlu0 %v249, 17
        %v253 = vpop.permute.xlu0 %252
        %vm254 = vcmask 138240
        %v255 = vsel %vm254, %v251, %v253
        %vm258 = vcmask 1043592
        %259 = vst.msk [vmem:[#allocation2] sm:$0xf] %vm258, %v251
        %260 = vst [vmem:[#allocation2 + $0x8] sm:$0xf] %v255
        %vm261 = vcmask 134144
        %262 = vst.msk [vmem:[#allocation2] sm:$0xf] %vm261, 0.0
        %s264 = scalar_lea.vmem [#allocation1], 1
        %265 = vst [vmem:[%s264] ss:$2 sm:$0xff] %v218
        %v266 = vld.sshfl [vmem:[#allocation1] sm:$0xff pattern:$0x75316420]
        %v267 = vld.sshfl [vmem:[#allocation1 + $0x8] sm:$0xff pattern:$0x75316420]
        %268 = vrot.lane.b32.xlu0 %v266, 16
        %v269 = vpop.permute.xlu0 %268
        %270 = vrot.lane.b32.xlu0 %v267, 16
        %v271 = vpop.permute.xlu0 %270
        %vm272 = vcmask 130048
        %v273 = vsel %vm272, %v269, %v271
        %vm276 = vcmask 1047684
        %277 = vst.msk [vmem:[#allocation2] sm:$0xf0] %vm276, %v269
        %278 = vst [vmem:[#allocation2 + $0x8] sm:$0xf0] %v273
        %vm279 = vcmask 130052
        %280 = vst.msk [vmem:[#allocation2] sm:$0xf0] %vm279, 0.0
        %282 = vst [vmem:[#allocation1] ss:$2 sm:$0xff] %v245
        %v283 = vld.sshfl [vmem:[#allocation1] sm:$0xff pattern:$0x75316420]
        %v284 = vld.sshfl [vmem:[#allocation1 + $0x8] sm:$0xff pattern:$0x75316420]
        %285 = vrot.lane.b32.xlu0 %v283, 15
        %v286 = vpop.permute.xlu0 %285
        %287 = vrot.lane.b32.xlu0 %v284, 15
        %v288 = vpop.permute.xlu0 %287
        %vm289 = vcmask 121856
        %v290 = vsel %vm289, %v286, %v288
        %vm293 = vcmask 1043576
        %294 = vst.msk [vmem:[#allocation2 + $0x10] sm:$0xf] %vm293, %v286
        %295 = vst [vmem:[#allocation2 + $0x18] sm:$0xf] %v290
        %vm296 = vcmask 117760
        %297 = vst.msk [vmem:[#allocation2 + $0x10] sm:$0xf] %vm296, 0.0
        %s298 = scalar_lea.vmem [#allocation1], 1
        %299 = vst [vmem:[%s298] ss:$2 sm:$0xff] %v233
        %v300 = vld.sshfl [vmem:[#allocation1] sm:$0xff pattern:$0x75316420]
        %v301 = vld.sshfl [vmem:[#allocation1 + $0x8] sm:$0xff pattern:$0x75316420]
        %302 = vrot.lane.b32.xlu0 %v300, 1
        %v303 = vpop.permute.xlu0 %302
        %304 = vrot.lane.b32.xlu0 %v301, 1
        %v305 = vpop.permute.xlu0 %304
        %vm306 = vcmask 7168
        %v307 = vsel %vm306, %v303, %v305
        %vm310 = vcmask 1047564
        %311 = vst.msk [vmem:[#allocation2 + $0x10] sm:$0xf0] %vm310, %v303
        %312 = vst [vmem:[#allocation2 + $0x18] sm:$0xf0] %v307
        %vm313 = vcmask 7172
        %314 = vst.msk [vmem:[#allocation2 + $0x10] sm:$0xf0] %vm313, 0.0
        %315 = vst [vmem:[#allocation1] ss:$2 sm:$0xff] %v218
        %v316 = vld.sshfl [vmem:[#allocation1] sm:$0xff pattern:$0x75316420]
        %v317 = vld.sshfl [vmem:[#allocation1 + $0x8] sm:$0xff pattern:$0x75316420]
        %320 = vst [vmem:[#allocation2 + $0x20] sm:$0xf] %v316
        %321 = vst [vmem:[#allocation2 + $0x28] sm:$0xf] %v317
        %s322 = scalar_lea.vmem [#allocation1], 1
        %323 = vst [vmem:[%s322] ss:$2 sm:$0xff] %v245
        %v324 = vld.sshfl [vmem:[#allocation1] sm:$0xff pattern:$0x75316420]
        %v325 = vld.sshfl [vmem:[#allocation1 + $0x8] sm:$0xff pattern:$0x75316420]
        %326 = vrot.lane.b32.xlu0 %v324, 127
        %v327 = vpop.permute.xlu0 %326
        %328 = vrot.lane.b32.xlu0 %v325, 127
        %v329 = vpop.permute.xlu0 %328
        %vm330 = vcmask 1039360
        %v331 = vsel %vm330, %v327, %v329
        %334 = vst [vmem:[#allocation2 + $0x20] sm:$0xf0] %v331
        %vm335 = vcmask 1039364
        %336 = vst.msk [vmem:[#allocation2 + $0x28] sm:$0xf0] %vm335, %v329
        %vm337 = vcmask 1048572
        %338 = vst.msk [vmem:[#allocation2 + $0x28] sm:$0xf0] %vm337, 0.0
        %339 = vst [vmem:[#allocation1] ss:$2 sm:$0xff] %v233
        %v340 = vld.sshfl [vmem:[#allocation1] sm:$0xff pattern:$0x75316420]
        %v341 = vld.sshfl [vmem:[#allocation1 + $0x8] sm:$0xff pattern:$0x75316420]
        %342 = vrot.lane.b32.xlu0 %v340, 113
        %v343 = vpop.permute.xlu0 %342
        %344 = vrot.lane.b32.xlu0 %v341, 113
        %v345 = vpop.permute.xlu0 %344
        %vm346 = vcmask 924672
        %v347 = vsel %vm346, %v343, %v345
        %350 = vst [vmem:[#allocation2 + $0x30] sm:$0xf] %v347
        %vm351 = vcmask 920576
        %352 = vst.msk [vmem:[#allocation2 + $0x38] sm:$0xf] %vm351, %v345
        %vm353 = vcmask 1044360
        %354 = vst.msk [vmem:[#allocation2 + $0x38] sm:$0xf] %vm353, 0.0
        %s355 = scalar_lea.vmem [#allocation1], 1
        %356 = vst [vmem:[%s355] ss:$2 sm:$0xff] %v218
        %v357 = vld.sshfl [vmem:[#allocation1] sm:$0xff pattern:$0x75316420]
        %v358 = vld.sshfl [vmem:[#allocation1 + $0x8] sm:$0xff pattern:$0x75316420]
        %359 = vrot.lane.b32.xlu0 %v357, 112
        %v360 = vpop.permute.xlu0 %359
        %361 = vrot.lane.b32.xlu0 %v358, 112
        %v362 = vpop.permute.xlu0 %361
        %vm363 = vcmask 916480
        %v364 = vsel %vm363, %v360, %v362
        %367 = vst [vmem:[#allocation2 + $0x30] sm:$0xf0] %v364
        %vm368 = vcmask 916484
        %369 = vst.msk [vmem:[#allocation2 + $0x38] sm:$0xf0] %vm368, %v362
        %vm370 = vcmask 1048452
        %371 = vst.msk [vmem:[#allocation2 + $0x38] sm:$0xf0] %vm370, 0.0
        %372 = vst [vmem:[#allocation1] ss:$2 sm:$0xff] %v245
        %v373 = vld.sshfl [vmem:[#allocation1] sm:$0xff pattern:$0x75316420]
        %v374 = vld.sshfl [vmem:[#allocation1 + $0x8] sm:$0xff pattern:$0x75316420]
        %375 = vrot.lane.b32.xlu0 %v373, 111
        %v376 = vpop.permute.xlu0 %375
        %377 = vrot.lane.b32.xlu0 %v374, 111
        %v378 = vpop.permute.xlu0 %377
        %vm379 = vcmask 908288
        %v380 = vsel %vm379, %v376, %v378
        %383 = vst [vmem:[#allocation2 + $0x40] sm:$0xf] %v380
        %vm384 = vcmask 904192
        %385 = vst.msk [vmem:[#allocation2 + $0x48] sm:$0xf] %vm384, %v378
        %vm386 = vcmask 1044344
        %387 = vst.msk [vmem:[#allocation2 + $0x48] sm:$0xf] %vm386, 0.0
        %v388 = vld [vmem:[#allocation8] sm:$0xff]
        %v389 = vld [vmem:[#allocation2] sm:$0xff]
        %v390 = vld [vmem:[#allocation2 + $0x8] sm:$0xff]
        %v391 = vld [vmem:[#allocation2 + $0x10] sm:$0xff]
        %v392 = vld [vmem:[#allocation2 + $0x18] sm:$0xff]
        %v393 = vld [vmem:[#allocation2 + $0x20] sm:$0xff]
        %v394 = vld [vmem:[#allocation2 + $0x28] sm:$0xff]
        %v395 = vld [vmem:[#allocation2 + $0x30] sm:$0xff]
        %v396 = vld [vmem:[#allocation2 + $0x38] sm:$0xff]
        %v397 = vld [vmem:[#allocation2 + $0x40] sm:$0xf]
        %v398 = vld [vmem:[#allocation2 + $0x48] sm:$0xf]
        %vm399 = vcmask 293888
        %v401 = vsel %vm399, %v388, 0
        %v404 = vsel %vm230, %v397, 0
        %v407 = vsel %vm230, %v398, 0
        %409 = vmatpush.msra.mxu0 0.0
        %410 = vmatpush.msra.mxu0 0.0
        %411 = vmatpush.msra.mxu0 0.0
        %412 = vmatpush.msra.mxu0 0.0
        %413 = vmatpush.msra.mxu0 0.0
        %414 = vmatpush.msra.mxu0 0.0
        %415 = vmatpush.msra.mxu0 0.0
        %416 = vmatpush.msra.mxu0 0.0
        %417 = vmatpush.msra.mxu0 0.0
        %418 = vmatpush.msra.mxu0 0.0
        %419 = vmatpush.msra.mxu0 0.0
        %420 = vmatpush.msra.mxu0 %v404
        %421 = vmatpush.msra.mxu0 %v395
        %422 = vmatpush.msra.mxu0 %v393
        %423 = vmatpush.msra.mxu0 %v391
        %424 = vmatpush.msra.mxu0 %v389
        %425 = vmatmul.f32.gmra.mxu0 %v401
        %v426 = vpop.f32.mrf.mxu0
        %v427 = vadd.f32 0.0, %v426
        %428 = vdwg.mxu0
        %429 = vmatpush.msra.mxu0 0.0
        %430 = vmatpush.msra.mxu0 0.0
        %431 = vmatpush.msra.mxu0 0.0
        %432 = vmatpush.msra.mxu0 0.0
        %433 = vmatpush.msra.mxu0 0.0
        %434 = vmatpush.msra.mxu0 0.0
        %435 = vmatpush.msra.mxu0 0.0
        %436 = vmatpush.msra.mxu0 0.0
        %437 = vmatpush.msra.mxu0 0.0
        %438 = vmatpush.msra.mxu0 0.0
        %439 = vmatpush.msra.mxu0 0.0
        %440 = vmatpush.msra.mxu0 %v407
        %441 = vmatpush.msra.mxu0 %v396
        %442 = vmatpush.msra.mxu0 %v394
        %443 = vmatpush.msra.mxu0 %v392
        %444 = vmatpush.msra.mxu0 %v390
        %445 = vmatmul.f32.gmra.mxu0 %v401
        %v446 = vpop.f32.mrf.mxu0
        %v447 = vadd.f32 0.0, %v446
        %448 = vdwg.mxu0
        %449 = vst [vmem:[%s217] sm:$0xff] %v427
        %450 = vst [vmem:[%s217 + $0x8] sm:$0xff] %v447
        %s451 = sand.u32 %s97, 1
        %s452 = scalar_lea.sflag [#allocation5], %s451
        %s453 = sand.u32 %s97, 1
        %s454 = smul.addr %s453, 16
        %s455 = scalar_lea.vmem [#allocation9], %s454
        // Predicated region
        $region45: #{tpu_custom_call.1} parent=31 // pred_check
          %p456 = pneg %p107
        $region46: #{tpu_custom_call.1} parent=31 // pred_check_branch
          %458 = sbr.rel (%p456) target = $region48
        $region47: #{tpu_custom_call.1} parent=31 // pred_region
          %460 = vsyncadd %s452, 0
          %s461 = smul.addr %s21, 2
          %s462 = smul.addr %s461, 8
          %s463 = scalar_lea.hbm %s3, %s462
          %s465 = sshll.u32 %s455, 4
          %s466 = int_to_ptr.vmem [resolvable:$true] %s465
          %s467 = sshll.u32 %s463, 4
          %s468 = int_to_ptr.hbm [resolvable:$true] %s467
          %470 = dma.vmem_to_hbm [thread:$0]  %s466, 256, %s468, %s452
        $region48: #{tpu_custom_call.1} parent=31 // pred_fallthru
          _
      $region32: #{tpu_custom_call.1} parent=5 // pred_fallthru
        _
      %p471 = scmp.le.s32.totalorder 2, %s16
      // Predicated region
      $region49: #{tpu_custom_call.1} parent=5 // pred_check
        %p472 = pneg %p471
      $region50: #{tpu_custom_call.1} parent=5 // pred_check_branch
        %474 = sbr.rel (%p472) target = $region52
      $region51: #{tpu_custom_call.1} parent=5 // pred_region
        %s475 = ssub.s32 %s16, 2
        // Predicated region
        $region53: #{tpu_custom_call.1} parent=51 // pred_check
          %p476 = pneg %p113
        $region54: #{tpu_custom_call.1} parent=51 // pred_check_branch
          %478 = sbr.rel (%p476) target = $region56
        $region55: #{tpu_custom_call.1} parent=51 // pred_region
          %s479 = sand.u32 %s98, 1
          %s480 = scalar_lea.sflag [#allocation5], %s479
          %s481 = sand.u32 %s98, 1
          %s482 = smul.addr %s481, 16
          %s483 = scalar_lea.vmem [#allocation9], %s482
          %485 = dma.done %s480, 256
        $region56: #{tpu_custom_call.1} parent=51 // pred_fallthru
          _
      $region52: #{tpu_custom_call.1} parent=5 // pred_fallthru
        _
    $region6: #{tpu_custom_call.1} parent=1 // loop_footer
      %s20 = sadd.s32 1, %s16
    $region7: #{tpu_custom_call.1} parent=1 // loop_footer_branch
      %15 = sbr.rel target = $region3
    $region8: #{tpu_custom_call.1} parent=1 // loop_exit
      _
    %486 = vsyncpa [#allocation4], 1
    %s487 = scalar_lea.sflag [#allocation4], 1
    %488 = vsyncpa %s487, 1
    %489 = vsyncpa [#allocation7], 1
    %490 = vsyncpa [#allocation5], 1
    %s491 = scalar_lea.sflag [#allocation5], 1
    %492 = vsyncpa %s491, 1

</llo_original>
